<compile_context>
chip_gen: v6e
topology: v6e:2x2x1
jax: 0.10.0
libtpu: 0.0.40
codegen_flags: <defaults>
</compile_context>

<pallas_src>
import math

import numpy as np
import jax
import jax.numpy as jnp
from jax import lax
from jax.experimental import pallas as pl
from jax.experimental.pallas import tpu as pltpu


# ----------------------------- Pallas kernel --------------------------------

def _make_fused_kernel(K, Co, Nt, rbf, cdt):
    """Fused (grouped-conv1d -> RFF map -> grouped-conv1d) for one (group, lane-block).

    Refs per grid step (g, n):
      w1_ref : (1, Co, Ci*K)      layer-1 weight (resident per group)
      w2_ref : (1, Co, R)         layer-2 weight, lane-dense fused layout, const folded
      m_ref  : (1, 1, K*Nt)       {0,1} conv-padding mask on the cos path   (rbf only)
      p_ref  : (1, 1, Ci*K, K*Nt) layer-1 patches at the K layer-2 tap positions
      o_ref  : (1, Co, Nt)
      phi_ref: (R, Nt)            VMEM scratch, packed RFF features
    """
    if rbf:
        def kernel(w1_ref, w2_ref, m_ref, p_ref, o_ref, phi_ref):
            # One wide layer-1 matmul over all K taps (lane axis = (tap, Nt)).
            z = jnp.dot(w1_ref[0], p_ref[0, 0],
                        preferred_element_type=jnp.float32)           # (Co, K*Nt) f32
            c = jnp.cos(z) * m_ref[0]    # mask kills cos(0)=1 at conv padding
            s = jnp.sin(z)               # padded columns have z == 0 -> sin == 0 exactly
            for k in range(K):           # static unroll: pack phi for the fused matmul
                sl = slice(k * Nt, (k + 1) * Nt)                       # aligned lane slice
                phi_ref[(2 * k) * Co:(2 * k + 1) * Co, :] = c[:, sl].astype(cdt)
                phi_ref[(2 * k + 1) * Co:(2 * k + 2) * Co, :] = s[:, sl].astype(cdt)
            # One long-contraction (R = 2*K*Co) layer-2 matmul -> output tile.
            o_ref[0] = jnp.dot(w2_ref[0], phi_ref[...],
                               preferred_element_type=jnp.float32).astype(o_ref.dtype)
        return kernel

    # 'arccos' (ReLU feature map): no mask needed at all (ReLU(0) == 0).
    def kernel(w1_ref, w2_ref, p_ref, o_ref, phi_ref):
        z = jnp.dot(w1_ref[0], p_ref[0, 0], preferred_element_type=jnp.float32)
        r = jnp.maximum(z, 0.0)
        for k in range(K):
            phi_ref[k * Co:(k + 1) * Co, :] = r[:, k * Nt:(k + 1) * Nt].astype(cdt)
        o_ref[0] = jnp.dot(w2_ref[0], phi_ref[...],
                           preferred_element_type=jnp.float32).astype(o_ref.dtype)
    return kernel


def conv_rff_block_fused(x, w1f, w2big, *, K, stride, pad, Lout1, Lout2,
                         rbf, compute_dtype=jnp.float32, block_lanes=None):
    """Fused ConvRFF block over all groups.

    x      : (B, G*Ci, L) float32
    w1f    : (G, Co, Ci*K)
    w2big  : (G, Co, R)   R = (2 if rbf else 1) * K * Co, const folded in
    returns: (G, Co, B*Lout2) float32
    """
    B, ctot, L = x.shape
    G, Co, CiK = w1f.shape
    Ci = ctot // G
    N = B * Lout2
    R = w2big.shape[-1]
    esz = jnp.dtype(compute_dtype).itemsize

    # ---- lane tile Nt: multiple of 128, double-buffered patch tile <= ~4 MiB
    # (fits v7x's 64 MiB VMEM with room to spare; v5e/v6e could go ~2x larger).
    if block_lanes is None:
        by_vmem = max(128, ((4 << 20) // max(1, K * CiK * esz)) // 128 * 128)
        block_lanes = int(min(2048, by_vmem))
    Nt = max(128, int(min(block_lanes, pl.cdiv(N, 128) * 128)))
    NB = pl.cdiv(N, Nt)
    NW = NB * Nt                                                     # padded lane extent

    # ---- glue: layer-1 im2col patches at the K layer-2 tap positions --------
    xpad = jnp.pad(x, ((0, 0), (0, 0), (pad, pad)))
    t2 = np.arange(Lout2)
    t1 = stride * t2[None, :] + np.arange(K)[:, None] - pad           # (K2, Lout2)
    valid = (t1 >= 0) & (t1 < Lout1)                                  # layer-2 zero pad
    t1c = np.clip(t1, 0, Lout1 - 1)
    src = stride * t1c[None, :, :] + np.arange(K)[:, None, None]      # (K1, K2, Lout2)
    pat = xpad[:, :, src]                                             # (B, G*Ci, K1, K2, Lout2)
    pat = pat.reshape(B, G, Ci, K, K, Lout2)
    pat = jnp.transpose(pat, (1, 4, 2, 3, 0, 5))                      # (G, K2, Ci, K1, B, Lout2)
    pat = pat * jnp.asarray(valid[None, :, None, None, None, :], jnp.float32)  # zero invalid cols
    patches = pat.reshape(G, K, CiK, N)
    patches = jnp.pad(patches, ((0, 0), (0, 0), (0, 0), (0, NW - N)))
    patches = (patches.reshape(G, K, CiK, NB, Nt)
                      .transpose(0, 3, 2, 1, 4)                       # (G, NB, CiK, K, Nt)
                      .reshape(G, NB, CiK, K * Nt)
                      .astype(compute_dtype))

    # {0,1} mask on the cos path, laid out to match the z lane axis (tap, Nt).
    maskf = np.tile(valid.astype(np.float32), (1, B))                 # (K, N)
    maskf = np.pad(maskf, ((0, 0), (0, NW - N)))
    maskf = maskf.reshape(K, NB, Nt).transpose(1, 0, 2).reshape(NB, 1, K * Nt)
    maskc = jnp.asarray(maskf, dtype=jnp.float32)

    w1c = w1f.astype(compute_dtype)
    w2c = w2big.astype(compute_dtype)

    kernel = _make_fused_kernel(K, Co, Nt, rbf, compute_dtype)

    in_specs = [pl.BlockSpec((1, Co, CiK), lambda g, n: (g, 0, 0)),
                pl.BlockSpec((1, Co, R), lambda g, n: (g, 0, 0))]
    operands = [w1c, w2c]
    if rbf:
        in_specs.append(pl.BlockSpec((1, 1, K * Nt), lambda g, n: (n, 0, 0)))
        operands.append(maskc)
    in_specs.append(pl.BlockSpec((1, 1, CiK, K * Nt), lambda g, n: (g, n, 0, 0)))
    operands.append(patches)

    flops = 2 * G * NW * Co * (CiK * K + R)
    transc = (2 * G * Co * K * NW) if rbf else 0
    bytes_acc = (patches.size * esz + w1c.size * esz + w2c.size * esz
                 + (maskc.size * 4 if rbf else 0) + G * Co * NW * 4)

    vmem_need = (2 * K * CiK * Nt * esz          # patches, double-buffered
                 + 2 * Co * Nt * 4               # output tile
                 + 2 * K * Nt * 4                # mask
                 + 2 * Co * (CiK + R) * esz      # weights
                 + R * Nt * esz)                 # phi scratch
    vmem_limit = int(min(64 * 2 ** 20, max(4 * vmem_need, 16 * 2 ** 20)))

    out = pl.pallas_call(
        kernel,
        out_shape=jax.ShapeDtypeStruct((G, Co, NW), jnp.float32),
        grid=(G, NB),
        in_specs=in_specs,
        out_specs=pl.BlockSpec((1, Co, Nt), lambda g, n: (g, 0, n)),
        scratch_shapes=[pltpu.VMEM((R, Nt), compute_dtype)],
        compiler_params=pltpu.CompilerParams(
            dimension_semantics=("parallel", "parallel"),
            vmem_limit_bytes=vmem_limit),
        cost_estimate=pl.CostEstimate(flops=int(flops),
                                      transcendentals=int(transc),
                                      bytes_accessed=int(bytes_acc)),
    )(*operands)
    return out[:, :, :N]


# --------------------------- ConvRFFBlock (JAX) -----------------------------

class ConvRFFBlockPallas:
    """Deterministically-initialized equivalent of ConvRFFBlock.forward."""

    def __init__(self, kernel, F0, mc, in_channels, out_channels,
                 kernel_size, stride, padding, group=1, *, key):
        self.kernel = kernel
        self.F0 = F0
        self.mc = mc
        self.in_channels = in_channels
        self.out_channels = out_channels
        self.kernel_size = kernel_size
        self.stride = stride
        self.padding = padding
        self.kernel_scale = 2 if kernel == "rbf" else 1

        k1, k2 = jax.random.split(key)
        # ConvRFFLayer parameters (init values from the PyTorch __init__)
        self.omega_mu = jnp.zeros((in_channels * kernel_size, out_channels), jnp.float32)
        self.omega_logsigma = jnp.ones((in_channels * kernel_size, out_channels), jnp.float32)
        self.omega_eps = jax.random.normal(
            k1, (mc, in_channels * kernel_size, out_channels), jnp.float32)
        self.log_scale = 0.5  # torch.ones(1) * 0.5
        # ConvRFFLinearLayer parameters (its in_channels == out_channels)
        kc = self.kernel_scale * out_channels * kernel_size
        self.w_mu = jnp.zeros((kc, out_channels), jnp.float32)
        self.w_logsigma = jnp.ones((kc, out_channels), jnp.float32)
        self.w_eps = jax.random.normal(k2, (mc, kc, out_channels), jnp.float32)

    def __call__(self, x, compute_dtype=jnp.float32, block_lanes=None):
        mc, Ci, Co, K = self.mc, self.in_channels, self.out_channels, self.kernel_size
        ks, stride, pad = self.kernel_scale, self.stride, self.padding
        bz = x.shape[0]

        if self.F0:
            # x.repeat(mc,1,1,1).reshape(bz, mc*Ci, L)  (exact torch semantics;
            # this deliberately mixes mc and batch rows, matching the reference).
            L = x.shape[-1]
            x = jnp.tile(x, (mc, 1, 1, 1)).reshape(bz, mc * Ci, L)

        L = x.shape[-1]
        Lout1 = (L + 2 * pad - K) // stride + 1
        Lout2 = (Lout1 + 2 * pad - K) // stride + 1
        const = ks * math.exp(0.5 * self.log_scale) / math.sqrt(Co * Lout1)

        # --- parameter reparameterization + torch .view layouts (glue) -------
        omega_q = self.omega_mu[None] + jnp.exp(0.5 * self.omega_logsigma)[None] * self.omega_eps
        w1f = omega_q.reshape(mc * Co, Ci, K).reshape(mc, Co, Ci * K)         # (G, Co, Ci*K)

        W_q = self.w_mu[None] + jnp.exp(0.5 * self.w_logsigma)[None] * self.w_eps
        w2 = W_q.reshape(mc * Co, ks * Co, K).reshape(mc, Co, ks * Co, K)     # (G, Co, ks*Co, K)
        if ks == 2:
            # phi channel layout: even in-channels = cos(z[o1]), odd = sin(z[o1]).
            # Pack to the lane-dense fused layout: row (2k+s)*Co + o1, const folded in.
            w2c = jnp.transpose(w2[:, :, 0::2, :], (0, 1, 3, 2))              # (G, Co, K, Co)
            w2s = jnp.transpose(w2[:, :, 1::2, :], (0, 1, 3, 2))
            w2big = jnp.stack([w2c, w2s], axis=3).reshape(mc, Co, 2 * K * Co) * const
        else:
            w2big = jnp.transpose(w2, (0, 1, 3, 2)).reshape(mc, Co, K * Co) * const

        out = conv_rff_block_fused(
            x, w1f, w2big, K=K, stride=stride, pad=pad,
            Lout1=Lout1, Lout2=Lout2, rbf=(ks == 2),
            compute_dtype=compute_dtype, block_lanes=block_lanes)             # (G, Co, bz*Lout2)

        # (G, Co, bz*Lout2) -> (bz, mc*Co, Lout2)   (small final relayout in glue)
        return (out.reshape(mc, Co, bz, Lout2)
                   .transpose(2, 0, 1, 3)
                   .reshape(bz, mc * Co, Lout2))


# ----------------------------- pure-JAX reference ----------------------------

def _ref_gconv(x, w, stride, padding):
    G, Co, Ci, K = w.shape
    return lax.conv_general_dilated(
        x, w.reshape(G * Co, Ci, K),
        window_strides=(stride,), padding=[(padding, padding)],
        dimension_numbers=("NCH", "OIH", "NCH"),
        feature_group_count=G)


def ref_forward(m, x):
    mc, Ci, Co, K = m.mc, m.in_channels, m.out_channels, m.kernel_size
    bz = x.shape[0]
    if m.F0:
        x = jnp.tile(x, (mc, 1, 1, 1)).reshape(bz, mc * Ci, x.shape[-1])
    omega_q = m.omega_mu[None] + jnp.exp(0.5 * m.omega_logsigma)[None] * m.omega_eps
    w1 = omega_q.reshape(mc * Co, Ci, K).reshape(mc, Co, Ci, K)
    z = _ref_gconv(x, w1, m.stride, m.padding)
    Lout = z.shape[-1]
    const = m.kernel_scale * math.exp(0.5 * m.log_scale) / math.sqrt(Co * Lout)
    if m.kernel == "rbf":
        phi = jnp.concatenate([jnp.cos(z), jnp.sin(z)], axis=-1) * const
    else:
        phi = jnp.maximum(z, 0.0) * const
    phi = phi.reshape(bz, m.kernel_scale * mc * Co, Lout)
    W_q = m.w_mu[None] + jnp.exp(0.5 * m.w_logsigma)[None] * m.w_eps
    w2 = W_q.reshape(mc * Co, m.kernel_scale * Co, K).reshape(mc, Co, m.kernel_scale * Co, K)
    return _ref_gconv(phi, w2, m.stride, m.padding)


# ----------------------------------- main ------------------------------------

if __name__ == "__main__":
    key = jax.random.PRNGKey(0)
    k_param, k_x = jax.random.split(key)

    B, C_in, L = 2, 4, 16
    block = ConvRFFBlockPallas(
        kernel="rbf", F0=True, mc=3,
        in_channels=C_in, out_channels=8,
        kernel_size=3, stride=2, padding=1,
        key=k_param)

    x = jax.random.normal(k_x, (B, C_in, L), dtype=jnp.float32)

    ref = jax.block_until_ready(ref_forward(block, x))

    # 1) exact-semantics check: f32 operands, tight tolerance vs. the reference.
    out_f32 = jax.block_until_ready(block(x, compute_dtype=jnp.float32))
    np.testing.assert_allclose(np.asarray(out_f32), np.asarray(ref), rtol=1e-4, atol=1e-4)

    # 2) production path: bf16 matmul operands, f32 accumulation (looser check).
    out_bf16 = jax.block_until_ready(block(x, compute_dtype=jnp.bfloat16))
    rel = (np.linalg.norm(np.asarray(out_bf16) - np.asarray(ref))
           / np.linalg.norm(np.asarray(ref)))
    assert rel < 0.15, f"bf16 relative L2 error too large: {rel}"

    print("KERNEL_OK")
</pallas_src>

<mosaic_0001>
module attributes {stable_mosaic.version = 11 : i64} {
  func.func @kernel(%arg0: i32, %arg1: i32, %arg2: memref<1x8x12xf32, #tpu.memory_space<vmem>>, %arg3: memref<1x8x48xf32, #tpu.memory_space<vmem>>, %arg4: memref<1x1x384xf32, #tpu.memory_space<vmem>>, %arg5: memref<1x1x12x384xf32, #tpu.memory_space<vmem>>, %arg6: memref<1x8x128xf32, #tpu.memory_space<vmem>>, %arg7: memref<48x128xf32, #tpu.memory_space<vmem>>) attributes {dimension_semantics = [#tpu.dimension_semantics<parallel>, #tpu.dimension_semantics<parallel>], iteration_bounds = array<i64: 3, 1>, scalar_prefetch = 0 : i64, scratch_operands = 1 : i64, tpu.core_type = #tpu.core_type<tc>, window_params = [{transform_indices = @transform_0, window_bounds = array<i64: 1, 8, 12>}, {transform_indices = @transform_1, window_bounds = array<i64: 1, 8, 48>}, {transform_indices = @transform_2, window_bounds = array<i64: 1, 1, 384>}, {transform_indices = @transform_3, window_bounds = array<i64: 1, 1, 12, 384>}, {transform_indices = @transform_4, window_bounds = array<i64: 1, 8, 128>}]} {
    %c0 = arith.constant 0 : index
    %c0_0 = arith.constant 0 : index
    %c0_1 = arith.constant 0 : index
    %0 = vector.load %arg2[%c0, %c0_0, %c0_1] : memref<1x8x12xf32, #tpu.memory_space<vmem>>, vector<1x8x12xf32>
    %1 = vector.shape_cast %0 : vector<1x8x12xf32> to vector<8x12xf32>
    %c0_2 = arith.constant 0 : index
    %c0_3 = arith.constant 0 : index
    %c0_4 = arith.constant 0 : index
    %c0_5 = arith.constant 0 : index
    %2 = vector.load %arg5[%c0_2, %c0_3, %c0_4, %c0_5] : memref<1x1x12x384xf32, #tpu.memory_space<vmem>>, vector<1x1x12x384xf32>
    %3 = vector.shape_cast %2 : vector<1x1x12x384xf32> to vector<12x384xf32>
    %cst = arith.constant dense<0.000000e+00> : vector<8x384xf32>
    %4 = tpu.matmul %1, %3, %cst {dimension_numbers = #tpu.dot_dimension_numbers<[1], [0], [0], [1], [0, 0, 1, 1], [], []>} : vector<8x12xf32>, vector<12x384xf32>, vector<8x384xf32> -> vector<8x384xf32>
    %5 = math.cos %4 : vector<8x384xf32>
    %c0_6 = arith.constant 0 : index
    %c0_7 = arith.constant 0 : index
    %c0_8 = arith.constant 0 : index
    %6 = vector.load %arg4[%c0_6, %c0_7, %c0_8] : memref<1x1x384xf32, #tpu.memory_space<vmem>>, vector<1x1x384xf32>
    %7 = vector.shape_cast %6 : vector<1x1x384xf32> to vector<1x384xf32>
    %8 = vector.broadcast %7 : vector<1x384xf32> to vector<8x384xf32>
    %9 = arith.mulf %5, %8 : vector<8x384xf32>
    %10 = math.sin %4 : vector<8x384xf32>
    %11 = vector.extract_strided_slice %9 {offsets = [0, 0], sizes = [8, 128], strides = [1, 1]} : vector<8x384xf32> to vector<8x128xf32>
    %c0_9 = arith.constant 0 : index
    %c0_10 = arith.constant 0 : index
    %12 = vector.load %arg7[%c0_9, %c0_10] : memref<48x128xf32, #tpu.memory_space<vmem>>, vector<8x128xf32>
    tpu.vector_store %arg7[%c0_9, %c0_10], %11 {strides = array<i32>} : memref<48x128xf32, #tpu.memory_space<vmem>>, vector<8x128xf32>,
    %13 = vector.extract_strided_slice %10 {offsets = [0, 0], sizes = [8, 128], strides = [1, 1]} : vector<8x384xf32> to vector<8x128xf32>
    %c8 = arith.constant 8 : index
    %c0_11 = arith.constant 0 : index
    %14 = vector.load %arg7[%c8, %c0_11] : memref<48x128xf32, #tpu.memory_space<vmem>>, vector<8x128xf32>
    tpu.vector_store %arg7[%c8, %c0_11], %13 {strides = array<i32>} : memref<48x128xf32, #tpu.memory_space<vmem>>, vector<8x128xf32>,
    %15 = vector.extract_strided_slice %9 {offsets = [0, 128], sizes = [8, 128], strides = [1, 1]} : vector<8x384xf32> to vector<8x128xf32>
    %c16 = arith.constant 16 : index
    %c0_12 = arith.constant 0 : index
    %16 = vector.load %arg7[%c16, %c0_12] : memref<48x128xf32, #tpu.memory_space<vmem>>, vector<8x128xf32>
    tpu.vector_store %arg7[%c16, %c0_12], %15 {strides = array<i32>} : memref<48x128xf32, #tpu.memory_space<vmem>>, vector<8x128xf32>,
    %17 = vector.extract_strided_slice %10 {offsets = [0, 128], sizes = [8, 128], strides = [1, 1]} : vector<8x384xf32> to vector<8x128xf32>
    %c24 = arith.constant 24 : index
    %c0_13 = arith.constant 0 : index
    %18 = vector.load %arg7[%c24, %c0_13] : memref<48x128xf32, #tpu.memory_space<vmem>>, vector<8x128xf32>
    tpu.vector_store %arg7[%c24, %c0_13], %17 {strides = array<i32>} : memref<48x128xf32, #tpu.memory_space<vmem>>, vector<8x128xf32>,
    %19 = vector.extract_strided_slice %9 {offsets = [0, 256], sizes = [8, 128], strides = [1, 1]} : vector<8x384xf32> to vector<8x128xf32>
    %c32 = arith.constant 32 : index
    %c0_14 = arith.constant 0 : index
    %20 = vector.load %arg7[%c32, %c0_14] : memref<48x128xf32, #tpu.memory_space<vmem>>, vector<8x128xf32>
    tpu.vector_store %arg7[%c32, %c0_14], %19 {strides = array<i32>} : memref<48x128xf32, #tpu.memory_space<vmem>>, vector<8x128xf32>,
    %21 = vector.extract_strided_slice %10 {offsets = [0, 256], sizes = [8, 128], strides = [1, 1]} : vector<8x384xf32> to vector<8x128xf32>
    %c40 = arith.constant 40 : index
    %c0_15 = arith.constant 0 : index
    %22 = vector.load %arg7[%c40, %c0_15] : memref<48x128xf32, #tpu.memory_space<vmem>>, vector<8x128xf32>
    tpu.vector_store %arg7[%c40, %c0_15], %21 {strides = array<i32>} : memref<48x128xf32, #tpu.memory_space<vmem>>, vector<8x128xf32>,
    %c0_16 = arith.constant 0 : index
    %c0_17 = arith.constant 0 : index
    %c0_18 = arith.constant 0 : index
    %23 = vector.load %arg3[%c0_16, %c0_17, %c0_18] : memref<1x8x48xf32, #tpu.memory_space<vmem>>, vector<1x8x48xf32>
    %24 = vector.shape_cast %23 : vector<1x8x48xf32> to vector<8x48xf32>
    %c0_19 = arith.constant 0 : index
    %c0_20 = arith.constant 0 : index
    %25 = vector.load %arg7[%c0_19, %c0_20] : memref<48x128xf32, #tpu.memory_space<vmem>>, vector<48x128xf32>
    %cst_21 = arith.constant dense<0.000000e+00> : vector<8x128xf32>
    %26 = tpu.matmul %24, %25, %cst_21 {dimension_numbers = #tpu.dot_dimension_numbers<[1], [0], [0], [1], [0, 0, 1, 1], [], []>} : vector<8x48xf32>, vector<48x128xf32>, vector<8x128xf32> -> vector<8x128xf32>
    %c0_22 = arith.constant 0 : index
    %c0_23 = arith.constant 0 : index
    %c0_24 = arith.constant 0 : index
    %27 = vector.load %arg6[%c0_22, %c0_23, %c0_24] : memref<1x8x128xf32, #tpu.memory_space<vmem>>, vector<1x8x128xf32>
    %28 = vector.shape_cast %27 : vector<1x8x128xf32> to vector<8x128xf32>
    %29 = vector.shape_cast %26 : vector<8x128xf32> to vector<1x8x128xf32>
    tpu.vector_store %arg6[%c0_22, %c0_23, %c0_24], %29 {strides = array<i32>} : memref<1x8x128xf32, #tpu.memory_space<vmem>>, vector<1x8x128xf32>,
    return
  }
  func.func @transform_0(%arg0: i32, %arg1: i32) -> (i32, i32, i32) {
    %c0_i32 = arith.constant 0 : i32
    %c0_i32_0 = arith.constant 0 : i32
    %c0_i32_1 = arith.constant 0 : i32
    return %arg0, %c0_i32, %c0_i32_0 : i32, i32, i32
  }
  func.func @transform_1(%arg0: i32, %arg1: i32) -> (i32, i32, i32) {
    %c0_i32 = arith.constant 0 : i32
    %c0_i32_0 = arith.constant 0 : i32
    %c0_i32_1 = arith.constant 0 : i32
    return %arg0, %c0_i32, %c0_i32_0 : i32, i32, i32
  }
  func.func @transform_2(%arg0: i32, %arg1: i32) -> (i32, i32, i32) {
    %c0_i32 = arith.constant 0 : i32
    %c0_i32_0 = arith.constant 0 : i32
    %c0_i32_1 = arith.constant 0 : i32
    return %arg1, %c0_i32, %c0_i32_0 : i32, i32, i32
  }
  func.func @transform_3(%arg0: i32, %arg1: i32) -> (i32, i32, i32, i32) {
    %c0_i32 = arith.constant 0 : i32
    %c0_i32_0 = arith.constant 0 : i32
    %c0_i32_1 = arith.constant 0 : i32
    return %arg0, %arg1, %c0_i32, %c0_i32_0 : i32, i32, i32, i32
  }
  func.func @transform_4(%arg0: i32, %arg1: i32) -> (i32, i32, i32) {
    %c0_i32 = arith.constant 0 : i32
    %c0_i32_0 = arith.constant 0 : i32
    return %arg0, %c0_i32, %arg1 : i32, i32, i32
  }
}

</mosaic_0001>

<llo_original>
// kernel: tpu_custom_call.1
$region0: #{tpu_custom_call.1}
  #allocation0 [shape = 'u32[]', space=smem, size = 0x4, offset = 0x4, fixed_abs, tag = 'smem constant byte address 0x4 - core index']
  #allocation1 [shape = 'u32[144,128]{1,0:T(1,128)}', space=vmem, size = 0x12000, scoped, tag = 'internal scratch']
  #allocation2 [shape = 'f32[48,128]{1,0:T(8,128)}', space=vmem, size = 0x6000, scoped, tag = 'scratch operand']
  %s0 = inlined_call_operand.vmem [shape: f32[3,8,12], index: 0, kind: input, shape index: {}]
  %s1 = inlined_call_operand.vmem [shape: f32[3,8,48], index: 1, kind: input, shape index: {}]
  %s2 = inlined_call_operand.vmem [shape: f32[1,1,384], index: 2, kind: input, shape index: {}]
  %s3 = inlined_call_operand.vmem [shape: f32[3,1,12,384], index: 3, kind: input, shape index: {}]
  %s4 = inlined_call_operand.hbm [shape: f32[3,8,128], index: 4, kind: output, shape index: {}]
  %s5 = sld [smem:[#allocation0]]
  $region49: #{tpu_custom_call.1} parent=0
    _
  %s7 = ssub.s32 1, %s5
  %s8 = scalar_select 0, %s7, %s5
  $region1: #{tpu_custom_call.1} parent=0
    #allocation3 [shape = 'u8[8192]{0}', space=vmem, size = 0x2000, scoped, tag = 'output window, operand 0']
    #allocation4 [shape = 's32[2]{0}', space=sflag, size = 0x8, scoped, tag = 'scoped memory for tpu_custom_call.1']
    %9 = vsyncpa [#allocation4], 0
    %s10 = scalar_lea.sflag [#allocation4], 1
    %11 = vsyncpa %s10, 0
    loop: start=0, step=1, limit=5
    $region2: #{tpu_custom_call.1} parent=1 // loop_pre_header
      _
    $region3: #{tpu_custom_call.1} parent=1 // loop_header
      %s13 = sphi 0, %s17
      %p14 = scmp.ge.s32.totalorder %s13, 5
      %s20 = sphi 0, %s32
      %s21 = sphi 0, %s28
      %s22 = sphi 0, %s20
      %s23 = sphi 0, %s21
      %s24 = sphi 0, %s22
      %s25 = sphi 0, %s23
      %s35 = sphi 0, %s37
      %s38 = sphi 0, %s35
      %s39 = sphi 0, %s38
      %s55 = sphi 0, %s39
      %s61 = sphi 0, %s63
      %s64 = sphi 0, %s61
      %s65 = sphi 0, %s64
      %s81 = sphi 0, %s65
      %s87 = sphi 0, %s89
      %s90 = sphi 0, %s87
      %s91 = sphi 0, %s90
      %s107 = sphi 0, %s91
      %s115 = sphi 0, %s117
      %s118 = sphi 0, %s115
      %s119 = sphi 0, %s118
      %s135 = sphi 0, %s119
      %s143 = sphi 0, %s145
      %s146 = sphi 0, %s143
      %s147 = sphi 0, %s146
      %s163 = sphi 0, %s147
    $region4: #{tpu_custom_call.1} parent=1 // loop_header_branch
      %16 = sbr.rel (%p14) target = $region8
    $region5: #{tpu_custom_call.1} parent=1 // loop_body
      %s18 = ssub.s32 %s13, 1
      %s19 = ssub.s32 %s13, 2
      %s26 = sadd.s32 1, %s21
      %p27 = scmp.ge.s32.totalorder %s26, 1
      %s28 = scalar_select %p27, 0, %s26
      %s29 = sadd.s32 1, %s20
      %s30 = scalar_select %p27, %s29, %s20
      %p31 = scmp.ge.s32.totalorder %s30, 3
      %s32 = scalar_select %p31, 0, %s30
      %s33 = ssub.s32 %s20, %s32
      %p34 = scmp.eq.s32.totalorder %s33, 0
      %s36 = sadd.s32 %s35, 1
      %s37 = scalar_select %p34, %s35, %s36
      %p40 = pneg %p34
      %p41 = scmp.eq.s32.totalorder %s13, 2
      %p42 = por %p40, %p41
      %p43 = scmp.ne.s32.totalorder %s35, %s38
      %p44 = scmp.eq.s32.totalorder %s13, 0
      %p45 = por %p43, %p44
      %p46 = scmp.ne.s32.totalorder %s35, %s38
      %p47 = scmp.eq.s32.totalorder %s18, 2
      %p48 = por %p46, %p47
      %p49 = scmp.ne.s32.totalorder %s38, %s39
      %p50 = scmp.eq.s32.totalorder %s18, 0
      %p51 = por %p49, %p50
      %p52 = scmp.ne.s32.totalorder %s38, %s39
      %p53 = scmp.eq.s32.totalorder %s19, 2
      %p54 = por %p52, %p53
      %p56 = scmp.ne.s32.totalorder %s39, %s55
      %p57 = scmp.eq.s32.totalorder %s19, 0
      %p58 = por %p56, %p57
      %s59 = ssub.s32 %s20, %s32
      %p60 = scmp.eq.s32.totalorder %s59, 0
      %s62 = sadd.s32 %s61, 1
      %s63 = scalar_select %p60, %s61, %s62
      %p66 = pneg %p60
      %p67 = scmp.eq.s32.totalorder %s13, 2
      %p68 = por %p66, %p67
      %p69 = scmp.ne.s32.totalorder %s61, %s64
      %p70 = scmp.eq.s32.totalorder %s13, 0
      %p71 = por %p69, %p70
      %p72 = scmp.ne.s32.totalorder %s61, %s64
      %p73 = scmp.eq.s32.totalorder %s18, 2
      %p74 = por %p72, %p73
      %p75 = scmp.ne.s32.totalorder %s64, %s65
      %p76 = scmp.eq.s32.totalorder %s18, 0
      %p77 = por %p75, %p76
      %p78 = scmp.ne.s32.totalorder %s64, %s65
      %p79 = scmp.eq.s32.totalorder %s19, 2
      %p80 = por %p78, %p79
      %p82 = scmp.ne.s32.totalorder %s65, %s81
      %p83 = scmp.eq.s32.totalorder %s19, 0
      %p84 = por %p82, %p83
      %s85 = ssub.s32 %s21, %s28
      %p86 = scmp.eq.s32.totalorder %s85, 0
      %s88 = sadd.s32 %s87, 1
      %s89 = scalar_select %p86, %s87, %s88
      %p92 = pneg %p86
      %p93 = scmp.eq.s32.totalorder %s13, 2
      %p94 = por %p92, %p93
      %p95 = scmp.ne.s32.totalorder %s87, %s90
      %p96 = scmp.eq.s32.totalorder %s13, 0
      %p97 = por %p95, %p96
      %p98 = scmp.ne.s32.totalorder %s87, %s90
      %p99 = scmp.eq.s32.totalorder %s18, 2
      %p100 = por %p98, %p99
      %p101 = scmp.ne.s32.totalorder %s90, %s91
      %p102 = scmp.eq.s32.totalorder %s18, 0
      %p103 = por %p101, %p102
      %p104 = scmp.ne.s32.totalorder %s90, %s91
      %p105 = scmp.eq.s32.totalorder %s19, 2
      %p106 = por %p104, %p105
      %p108 = scmp.ne.s32.totalorder %s91, %s107
      %p109 = scmp.eq.s32.totalorder %s19, 0
      %p110 = por %p108, %p109
      %s111 = ssub.s32 %s20, %s32
      %s112 = ssub.s32 %s21, %s28
      %s113 = sor.u32 %s111, %s112
      %p114 = scmp.eq.s32.totalorder %s113, 0
      %s116 = sadd.s32 %s115, 1
      %s117 = scalar_select %p114, %s115, %s116
      %p120 = pneg %p114
      %p121 = scmp.eq.s32.totalorder %s13, 2
      %p122 = por %p120, %p121
      %p123 = scmp.ne.s32.totalorder %s115, %s118
      %p124 = scmp.eq.s32.totalorder %s13, 0
      %p125 = por %p123, %p124
      %p126 = scmp.ne.s32.totalorder %s115, %s118
      %p127 = scmp.eq.s32.totalorder %s18, 2
      %p128 = por %p126, %p127
      %p129 = scmp.ne.s32.totalorder %s118, %s119
      %p130 = scmp.eq.s32.totalorder %s18, 0
      %p131 = por %p129, %p130
      %p132 = scmp.ne.s32.totalorder %s118, %s119
      %p133 = scmp.eq.s32.totalorder %s19, 2
      %p134 = por %p132, %p133
      %p136 = scmp.ne.s32.totalorder %s119, %s135
      %p137 = scmp.eq.s32.totalorder %s19, 0
      %p138 = por %p136, %p137
      %s139 = ssub.s32 %s20, %s32
      %s140 = ssub.s32 %s21, %s28
      %s141 = sor.u32 %s139, %s140
      %p142 = scmp.eq.s32.totalorder %s141, 0
      %s144 = sadd.s32 %s143, 1
      %s145 = scalar_select %p142, %s143, %s144
      %p148 = pneg %p142
      %p149 = scmp.eq.s32.totalorder %s13, 2
      %p150 = por %p148, %p149
      %p151 = scmp.ne.s32.totalorder %s143, %s146
      %p152 = scmp.eq.s32.totalorder %s13, 0
      %p153 = por %p151, %p152
      %p154 = scmp.ne.s32.totalorder %s143, %s146
      %p155 = scmp.eq.s32.totalorder %s18, 2
      %p156 = por %p154, %p155
      %p157 = scmp.ne.s32.totalorder %s146, %s147
      %p158 = scmp.eq.s32.totalorder %s18, 0
      %p159 = por %p157, %p158
      %p160 = scmp.ne.s32.totalorder %s146, %s147
      %p161 = scmp.eq.s32.totalorder %s19, 2
      %p162 = por %p160, %p161
      %p164 = scmp.ne.s32.totalorder %s147, %s163
      %p165 = scmp.eq.s32.totalorder %s19, 0
      %p166 = por %p164, %p165
      %p167 = scmp.le.s32.totalorder 1, %s13
      %p168 = scmp.lt.s32.totalorder %s13, 4
      %p169 = pnand %p167, %p168
      %p170 = pneg %p169
      // Predicated region
      $region9: #{tpu_custom_call.1} parent=5 // pred_check
        _
      $region10: #{tpu_custom_call.1} parent=5 // pred_check_branch
        %172 = sbr.rel (%p169) target = $region12
      $region11: #{tpu_custom_call.1} parent=5 // pred_region
        %s173 = ssub.s32 %s13, 1
        // Predicated region
        $region13: #{tpu_custom_call.1} parent=11 // pred_check
          %p174 = pneg %p103
        $region14: #{tpu_custom_call.1} parent=11 // pred_check_branch
          %176 = sbr.rel (%p174) target = $region16
        $region15: #{tpu_custom_call.1} parent=11 // pred_region
          %p177 = scmp.lt.s32.totalorder %s23, 0
          %s178 = scalar_select %p177, %s23, 0
          %s179 = smul.addr %s178, 3
          %s180 = scalar_lea.vmem %s2, %s179
        $region16: #{tpu_custom_call.1} parent=11 // pred_fallthru
          _
      $region12: #{tpu_custom_call.1} parent=5 // pred_fallthru
        _
      %p181 = scmp.lt.s32.totalorder %s13, 3
      // Predicated region
      $region17: #{tpu_custom_call.1} parent=5 // pred_check
        %p182 = pneg %p181
      $region18: #{tpu_custom_call.1} parent=5 // pred_check_branch
        %184 = sbr.rel (%p182) target = $region20
      $region19: #{tpu_custom_call.1} parent=5 // pred_region
        // Predicated region
        $region21: #{tpu_custom_call.1} parent=19 // pred_check
          %p185 = pneg %p45
        $region22: #{tpu_custom_call.1} parent=19 // pred_check_branch
          %187 = sbr.rel (%p185) target = $region24
        $region23: #{tpu_custom_call.1} parent=19 // pred_region
          %p188 = scmp.lt.s32.totalorder %s20, 2
          %s189 = scalar_select %p188, %s20, 2
          %s190 = smul.addr %s189, 8
          %s191 = scalar_lea.vmem %s0, %s190
        $region24: #{tpu_custom_call.1} parent=19 // pred_fallthru
          _
        // Predicated region
        $region25: #{tpu_custom_call.1} parent=19 // pred_check
          %p192 = pneg %p71
        $region26: #{tpu_custom_call.1} parent=19 // pred_check_branch
          %194 = sbr.rel (%p192) target = $region28
        $region27: #{tpu_custom_call.1} parent=19 // pred_region
          %p195 = scmp.lt.s32.totalorder %s20, 2
          %s196 = scalar_select %p195, %s20, 2
          %s197 = smul.addr %s196, 8
          %s198 = scalar_lea.vmem %s1, %s197
        $region28: #{tpu_custom_call.1} parent=19 // pred_fallthru
          _
        // Predicated region
        $region29: #{tpu_custom_call.1} parent=19 // pred_check
          %p199 = pneg %p125
        $region30: #{tpu_custom_call.1} parent=19 // pred_check_branch
          %201 = sbr.rel (%p199) target = $region32
        $region31: #{tpu_custom_call.1} parent=19 // pred_region
          %p202 = scmp.lt.s32.totalorder %s20, 2
          %s203 = scalar_select %p202, %s20, 2
          %p204 = scmp.lt.s32.totalorder %s21, 0
          %s205 = scalar_select %p204, %s21, 0
          %s206 = smul.addr %s205, 6
          %s207 = smul.addr %s203, 6
          %s208 = sadd.s32 %s206, %s207
          %s209 = smul.addr %s208, 8
          %s210 = scalar_lea.vmem %s3, %s209
        $region32: #{tpu_custom_call.1} parent=19 // pred_fallthru
          _
      $region20: #{tpu_custom_call.1} parent=5 // pred_fallthru
        _
      %p211 = scmp.le.s32.totalorder 1, %s13
      %p212 = scmp.lt.s32.totalorder %s13, 4
      %p213 = pnand %p211, %p212
      %p214 = pneg %p213
      // Predicated region
      $region33: #{tpu_custom_call.1} parent=5 // pred_check
        _
      $region34: #{tpu_custom_call.1} parent=5 // pred_check_branch
        %216 = sbr.rel (%p213) target = $region36
      $region35: #{tpu_custom_call.1} parent=5 // pred_region
        %s217 = ssub.s32 %s13, 1
        %p218 = scmp.lt.s32.totalorder %s22, 2
        %s219 = scalar_select %p218, %s22, 2
        %s220 = smul.addr %s219, 8
        %s221 = scalar_lea.vmem %s0, %s220
        %p222 = pneg %p51
        %p223 = pneg %p48
        %p224 = scmp.lt.s32.totalorder %s22, 2
        %s225 = scalar_select %p224, %s22, 2
        %s226 = smul.addr %s225, 8
        %s227 = scalar_lea.vmem %s1, %s226
        %p228 = pneg %p77
        %p229 = pneg %p74
        %p230 = scmp.lt.s32.totalorder %s23, 0
        %s231 = scalar_select %p230, %s23, 0
        %s232 = smul.addr %s231, 3
        %s233 = scalar_lea.vmem %s2, %s232
        %p234 = pneg %p103
        %p235 = pneg %p100
        %p236 = scmp.lt.s32.totalorder %s22, 2
        %s237 = scalar_select %p236, %s22, 2
        %p238 = scmp.lt.s32.totalorder %s23, 0
        %s239 = scalar_select %p238, %s23, 0
        %s240 = smul.addr %s239, 6
        %s241 = smul.addr %s237, 6
        %s242 = sadd.s32 %s240, %s241
        %s243 = smul.addr %s242, 8
        %s244 = scalar_lea.vmem %s3, %s243
        %p245 = pneg %p131
        %p246 = pneg %p128
        %p247 = pneg %p159
        %p248 = pneg %p156
        %s249 = sand.u32 %s146, 1
        %s250 = scalar_lea.sflag [#allocation4], %s249
        %s251 = sand.u32 %s146, 1
        %s252 = smul.addr %s251, 8
        %s253 = scalar_lea.vmem [#allocation3], %s252
        %p254 = scmp.lt.s32.totalorder %s22, 2
        %s255 = scalar_select %p254, %s22, 2
        %s256 = smul.addr %s255, 8
        %s257 = scalar_lea.vmem %s0, %s256
        %p258 = scmp.lt.s32.totalorder %s22, 2
        %s259 = scalar_select %p258, %s22, 2
        %s260 = smul.addr %s259, 8
        %s261 = scalar_lea.vmem %s1, %s260
        %p262 = scmp.lt.s32.totalorder %s23, 0
        %s263 = scalar_select %p262, %s23, 0
        %s264 = smul.addr %s263, 3
        %s265 = scalar_lea.vmem %s2, %s264
        %p266 = scmp.lt.s32.totalorder %s22, 2
        %s267 = scalar_select %p266, %s22, 2
        %p268 = scmp.lt.s32.totalorder %s23, 0
        %s269 = scalar_select %p268, %s23, 0
        %s270 = smul.addr %s269, 6
        %s271 = smul.addr %s267, 6
        %s272 = sadd.s32 %s270, %s271
        %s273 = smul.addr %s272, 8
        %s274 = scalar_lea.vmem %s3, %s273
        %v275 = vld [vmem:[%s257] sm:$0xff]
        %v276 = vld [vmem:[%s274] sm:$0xff]
        %v277 = vld [vmem:[%s274 + $0x8] sm:$0xff]
        %v278 = vld [vmem:[%s274 + $0x10] sm:$0xff]
        %v279 = vld [vmem:[%s274 + $0x18] sm:$0xf]
        %v280 = vld [vmem:[%s274 + $0x20] sm:$0xf]
        %v281 = vld [vmem:[%s274 + $0x28] sm:$0xf]
        %vm282 = vcmask 97280
        %v284 = vsel %vm282, %v275, 0
        %vm286 = vcmask 1043456
        %v288 = vsel %vm286, %v279, 0
        %v291 = vsel %vm286, %v280, 0
        %v294 = vsel %vm286, %v281, 0
        %296 = vmatprep.subr.mxu0 0.0
        %297 = vmatpush1.msra.mxu0 0.0
        %298 = vmatprep.subr.mxu0 0.0
        %299 = vmatpush1.msra.mxu0 0.0
        %300 = vmatprep.subr.mxu0 0.0
        %301 = vmatpush1.msra.mxu0 0.0
        %302 = vmatprep.subr.mxu0 0.0
        %303 = vmatpush1.msra.mxu0 0.0
        %304 = vmatprep.subr.mxu0 0.0
        %305 = vmatpush1.msra.mxu0 0.0
        %306 = vmatprep.subr.mxu0 0.0
        %307 = vmatpush1.msra.mxu0 0.0
        %308 = vmatprep.subr.mxu0 0.0
        %309 = vmatpush1.msra.mxu0 0.0
        %310 = vmatprep.subr.mxu0 0.0
        %311 = vmatpush1.msra.mxu0 0.0
        %312 = vmatprep.subr.mxu0 0.0
        %313 = vmatpush1.msra.mxu0 0.0
        %314 = vmatprep.subr.mxu0 0.0
        %315 = vmatpush1.msra.mxu0 0.0
        %316 = vmatprep.subr.mxu0 0.0
        %317 = vmatpush1.msra.mxu0 0.0
        %318 = vmatprep.subr.mxu0 0.0
        %319 = vmatpush1.msra.mxu0 0.0
        %320 = vmatprep.subr.mxu0 0.0
        %321 = vmatpush1.msra.mxu0 0.0
        %322 = vmatprep.subr.mxu0 0.0
        %323 = vmatpush1.msra.mxu0 0.0
        %324 = vmatprep.subr.mxu0 %v291
        %325 = vmatpush1.msra.mxu0 %v288
        %326 = vmatprep.subr.mxu0 %v277
        %327 = vmatpush1.msra.mxu0 %v276
        %328 = vmatprep.subr.mxu0 0.0
        %329 = vmatpush2.msra.mxu0 0.0
        %330 = vmatprep.subr.mxu0 0.0
        %331 = vmatpush2.msra.mxu0 0.0
        %332 = vmatprep.subr.mxu0 0.0
        %333 = vmatpush2.msra.mxu0 0.0
        %334 = vmatprep.subr.mxu0 0.0
        %335 = vmatpush2.msra.mxu0 0.0
        %336 = vmatprep.subr.mxu0 0.0
        %337 = vmatpush2.msra.mxu0 0.0
        %338 = vmatprep.subr.mxu0 0.0
        %339 = vmatpush2.msra.mxu0 0.0
        %340 = vmatprep.subr.mxu0 0.0
        %341 = vmatpush2.msra.mxu0 0.0
        %342 = vmatprep.subr.mxu0 0.0
        %343 = vmatpush2.msra.mxu0 0.0
        %344 = vmatprep.subr.mxu0 0.0
        %345 = vmatpush2.msra.mxu0 0.0
        %346 = vmatprep.subr.mxu0 0.0
        %347 = vmatpush2.msra.mxu0 0.0
        %348 = vmatprep.subr.mxu0 0.0
        %349 = vmatpush2.msra.mxu0 0.0
        %350 = vmatprep.subr.mxu0 0.0
        %351 = vmatpush2.msra.mxu0 0.0
        %352 = vmatprep.subr.mxu0 0.0
        %353 = vmatpush2.msra.mxu0 0.0
        %354 = vmatprep.subr.mxu0 0.0
        %355 = vmatpush2.msra.mxu0 0.0
        %356 = vmatprep.subr.mxu0 0.0
        %357 = vmatpush2.msra.mxu0 0.0
        %358 = vmatprep.subr.mxu0 0.0
        %359 = vmatpush2.msra.mxu0 0.0
        %360 = vmatprep.mubr.f32.mxu0 0.0
        %361 = vmatmul.mubr.f32.gmra.mxu0 %v284
        %v362 = vpop.f32.mrf.mxu0
        %v363 = vadd.f32 0.0, %v362
        %v364 = vpop.f32.mrf.mxu0
        %v365 = vadd.f32 0.0, %v364
        %366 = vdwg.mxu0
        %367 = vmatprep.subr.mxu0 0.0
        %368 = vmatpush1.msra.mxu0 0.0
        %369 = vmatprep.subr.mxu0 0.0
        %370 = vmatpush1.msra.mxu0 0.0
        %371 = vmatprep.subr.mxu0 0.0
        %372 = vmatpush1.msra.mxu0 0.0
        %373 = vmatprep.subr.mxu0 0.0
        %374 = vmatpush1.msra.mxu0 0.0
        %375 = vmatprep.subr.mxu0 0.0
        %376 = vmatpush1.msra.mxu0 0.0
        %377 = vmatprep.subr.mxu0 0.0
        %378 = vmatpush1.msra.mxu0 0.0
        %379 = vmatprep.subr.mxu0 0.0
        %380 = vmatpush1.msra.mxu0 0.0
        %381 = vmatprep.subr.mxu0 0.0
        %382 = vmatpush1.msra.mxu0 0.0
        %383 = vmatprep.subr.mxu0 0.0
        %384 = vmatpush1.msra.mxu0 0.0
        %385 = vmatprep.subr.mxu0 0.0
        %386 = vmatpush1.msra.mxu0 0.0
        %387 = vmatprep.subr.mxu0 0.0
        %388 = vmatpush1.msra.mxu0 0.0
        %389 = vmatprep.subr.mxu0 0.0
        %390 = vmatpush1.msra.mxu0 0.0
        %391 = vmatprep.subr.mxu0 0.0
        %392 = vmatpush1.msra.mxu0 0.0
        %393 = vmatprep.subr.mxu0 0.0
        %394 = vmatpush1.msra.mxu0 0.0
        %395 = vmatprep.subr.mxu0 0.0
        %396 = vmatpush1.msra.mxu0 %v294
        %397 = vmatprep.subr.mxu0 0.0
        %398 = vmatpush1.msra.mxu0 %v278
        %399 = vmatprep.subr.mxu0 0.0
        %400 = vmatpush2.msra.mxu0 0.0
        %401 = vmatprep.subr.mxu0 0.0
        %402 = vmatpush2.msra.mxu0 0.0
        %403 = vmatprep.subr.mxu0 0.0
        %404 = vmatpush2.msra.mxu0 0.0
        %405 = vmatprep.subr.mxu0 0.0
        %406 = vmatpush2.msra.mxu0 0.0
        %407 = vmatprep.subr.mxu0 0.0
        %408 = vmatpush2.msra.mxu0 0.0
        %409 = vmatprep.subr.mxu0 0.0
        %410 = vmatpush2.msra.mxu0 0.0
        %411 = vmatprep.subr.mxu0 0.0
        %412 = vmatpush2.msra.mxu0 0.0
        %413 = vmatprep.subr.mxu0 0.0
        %414 = vmatpush2.msra.mxu0 0.0
        %415 = vmatprep.subr.mxu0 0.0
        %416 = vmatpush2.msra.mxu0 0.0
        %417 = vmatprep.subr.mxu0 0.0
        %418 = vmatpush2.msra.mxu0 0.0
        %419 = vmatprep.subr.mxu0 0.0
        %420 = vmatpush2.msra.mxu0 0.0
        %421 = vmatprep.subr.mxu0 0.0
        %422 = vmatpush2.msra.mxu0 0.0
        %423 = vmatprep.subr.mxu0 0.0
        %424 = vmatpush2.msra.mxu0 0.0
        %425 = vmatprep.subr.mxu0 0.0
        %426 = vmatpush2.msra.mxu0 0.0
        %427 = vmatprep.subr.mxu0 0.0
        %428 = vmatpush2.msra.mxu0 0.0
        %429 = vmatprep.subr.mxu0 0.0
        %430 = vmatpush2.msra.mxu0 0.0
        %431 = vmatprep.mubr.f32.mxu0 0.0
        %432 = vmatmul.mubr.f32.gmra.mxu0 %v284
        %v433 = vpop.f32.mrf.mxu0
        %v434 = vadd.f32 0.0, %v433
        %v435 = vpop.f32.mrf.mxu0
        %436 = vdwg.mxu0
        %v437 = vand.u32 2147483647, %v363
        %vm438 = vcmp.le.f32.partialorder %v437, 0.7853982
        %vm439 = vcmp.lt.s32.totalorder %v363, 0
        %v440 = vand.u32 %v363, 2139095040
        %v441 = vshrl.u32 %v440, 23
        %v442 = vsub.s32 %v441, 127
        %v443 = vand.u32 2147483647, %v363
        %v444 = vand.u32 %v443, 8388607
        %v445 = vor.u32 %v444, 8388608
        %v446 = vsub.s32 0, %v445
        %v447 = vadd.s32 %v442, 1
        %vm448 = vcmp.gt.s32.totalorder %v447, 0
        %v449 = vsel %vm448, %v447, 0
        %v450 = vshrl.u32 %v449, 5
        %v451 = vand.u32 %v449, 31
        %v452 = vsub.s32 32, %v451
        %v453 = vshrl.u32 683565275, %v452
        %v454 = vshll.u32 683565275, %v451
        %v455 = vshrl.u32 2475754826, %v452
        %v456 = vor.u32 %v454, %v455
        %v457 = vshll.u32 2475754826, %v451
        %v458 = vshrl.u32 2131351028, %v452
        %v459 = vor.u32 %v457, %v458
        %v460 = vshll.u32 2131351028, %v451
        %v461 = vshrl.u32 2102212464, %v452
        %v462 = vor.u32 %v460, %v461
        %v463 = vshll.u32 2102212464, %v451
        %v464 = vshrl.u32 920167782, %v452
        %v465 = vor.u32 %v463, %v464
        %v466 = vshll.u32 920167782, %v451
        %v467 = vshrl.u32 1326507024, %v452
        %v468 = vor.u32 %v466, %v467
        %vm469 = vcmp.lt.s32.totalorder %v450, 1
        %vm470 = vcmp.lt.s32.totalorder %v450, 2
        %vm471 = vcmp.lt.s32.totalorder %v450, 3
        %vm472 = vcmp.lt.s32.totalorder %v450, 4
        %v473 = vsel %vm469, %v453, %v456
        %v474 = vsel %vm472, %v462, 2102212464
        %v475 = vsel %vm471, %v459, %v474
        %v476 = vsel %vm470, %v473, %v475
        %v477 = vsel %vm469, %v456, %v459
        %v478 = vsel %vm472, %v465, 920167782
        %v479 = vsel %vm471, %v462, %v478
        %v480 = vsel %vm470, %v477, %v479
        %v481 = vsel %vm469, %v459, %v462
        %v482 = vsel %vm472, %v468, 1326507024
        %v483 = vsel %vm471, %v465, %v482
        %v484 = vsel %vm470, %v481, %v483
        %v485 = vshll.u32 %v445, 8
        %v486 = vmul.u32.u64.compose %v485, %v484
        %v487 = vextract.low.u32 %v486
        %v488 = vextract.high.u32 %v486
        %v489 = vmul.u32.u64.compose %v485, %v480
        %v490 = vextract.low.u32 %v489
        %v491 = vextract.high.u32 %v489
        %v492 = vmul.u32 %v485, %v476
        %v493 = vadd.s32 %v488, %v490
        %vm494 = vc.u32 %v488, %v490
        %v495 = vadd.s32 %v491, 1
        %v496 = vsel %vm494, %v495, %v491
        %v497 = vadd.s32 %v492, %v496
        %v498 = vadd.s32 %v497, 536870912
        %v499 = vshrl.u32 %v498, 30
        %v500 = vshll.u32 %v499, 30
        %v501 = vsub.s32 %v497, %v500
        %vm502 = vcmp.lt.s32.totalorder %v501, 0
        %v503 = vsub.s32 0, %v501
        %v504 = vsel %vm502, %v503, %v501
        %v505 = vclz %v504
        %v506 = vsub.s32 %v505, 2
        %vm507 = vcmp.gt.s32.totalorder 0, %v506
        %v508 = vsel %vm507, 0, %v506
        %v509 = vsub.s32 32, %v508
        %v510 = vshll.u32 %v501, %v508
        %v511 = vshrl.u32 %v493, %v509
        %v512 = vor.u32 %v510, %v511
        %v513 = vsub.s32 4294967266, %v508
        %v514 = vadd.s32 %v513, 127
        %v515 = vshll.u32 %v514, 23
        %v516 = vor.u32 4788187, %v515
        %v517 = vand.u32 2147483647, %v516
        %v519 = vcvt.s32.f32 %v512
        %v520 = vmul.f32 %v519, %v517
        %v521 = vxor.u32 %v520, 2147483648
        %v522 = vsel %vm439, %v521, %v520
        %v523 = vsub.s32 4, %v499
        %v524 = vsel %vm439, %v523, %v499
        %v525 = vsel %vm438, %v363, %v522
        %v526 = vsel %vm438, 0, %v524
        %v527 = vcosq.f32.pop %v525
        %v528 = vsinq.f32.pop %v525
        %vm529 = vweird.f32 %v363
        %v530 = vand.u32 %v526, 3
        %vm531 = vcmp.lt.s32.totalorder %v530, 2
        %vm532 = vcmp.eq.s32.totalorder %v530, 0
        %v533 = vxor.u32 %v528, 2147483648
        %v534 = vsel %vm532, %v527, %v533
        %vm535 = vcmp.eq.s32.totalorder %v530, 2
        %v536 = vxor.u32 %v527, 2147483648
        %v537 = vsel %vm535, %v536, %v528
        %v538 = vsel %vm531, %v534, %v537
        %v539 = vsel %vm529, nan, %v538
        %v540 = vand.u32 2147483647, %v365
        %vm541 = vcmp.le.f32.partialorder %v540, 0.7853982
        %vm542 = vcmp.lt.s32.totalorder %v365, 0
        %v543 = vand.u32 %v365, 2139095040
        %v544 = vshrl.u32 %v543, 23
        %v545 = vsub.s32 %v544, 127
        %v546 = vand.u32 2147483647, %v365
        %v547 = vand.u32 %v546, 8388607
        %v548 = vor.u32 %v547, 8388608
        %v549 = vsub.s32 0, %v548
        %v550 = vadd.s32 %v545, 1
        %vm551 = vcmp.gt.s32.totalorder %v550, 0
        %v552 = vsel %vm551, %v550, 0
        %v553 = vshrl.u32 %v552, 5
        %v554 = vand.u32 %v552, 31
        %v555 = vsub.s32 32, %v554
        %v556 = vshrl.u32 683565275, %v555
        %v557 = vshll.u32 683565275, %v554
        %v558 = vshrl.u32 2475754826, %v555
        %v559 = vor.u32 %v557, %v558
        %v560 = vshll.u32 2475754826, %v554
        %v561 = vshrl.u32 2131351028, %v555
        %v562 = vor.u32 %v560, %v561
        %v563 = vshll.u32 2131351028, %v554
        %v564 = vshrl.u32 2102212464, %v555
        %v565 = vor.u32 %v563, %v564
        %v566 = vshll.u32 2102212464, %v554
        %v567 = vshrl.u32 920167782, %v555
        %v568 = vor.u32 %v566, %v567
        %v569 = vshll.u32 920167782, %v554
        %v570 = vshrl.u32 1326507024, %v555
        %v571 = vor.u32 %v569, %v570
        %vm572 = vcmp.lt.s32.totalorder %v553, 1
        %vm573 = vcmp.lt.s32.totalorder %v553, 2
        %vm574 = vcmp.lt.s32.totalorder %v553, 3
        %vm575 = vcmp.lt.s32.totalorder %v553, 4
        %v576 = vsel %vm572, %v556, %v559
        %v577 = vsel %vm575, %v565, 2102212464
        %v578 = vsel %vm574, %v562, %v577
        %v579 = vsel %vm573, %v576, %v578
        %v580 = vsel %vm572, %v559, %v562
        %v581 = vsel %vm575, %v568, 920167782
        %v582 = vsel %vm574, %v565, %v581
        %v583 = vsel %vm573, %v580, %v582
        %v584 = vsel %vm572, %v562, %v565
        %v585 = vsel %vm575, %v571, 1326507024
        %v586 = vsel %vm574, %v568, %v585
        %v587 = vsel %vm573, %v584, %v586
        %v588 = vshll.u32 %v548, 8
        %v589 = vmul.u32.u64.compose %v588, %v587
        %v590 = vextract.low.u32 %v589
        %v591 = vextract.high.u32 %v589
        %v592 = vmul.u32.u64.compose %v588, %v583
        %v593 = vextract.low.u32 %v592
        %v594 = vextract.high.u32 %v592
        %v595 = vmul.u32 %v588, %v579
        %v596 = vadd.s32 %v591, %v593
        %vm597 = vc.u32 %v591, %v593
        %v598 = vadd.s32 %v594, 1
        %v599 = vsel %vm597, %v598, %v594
        %v600 = vadd.s32 %v595, %v599
        %v601 = vadd.s32 %v600, 536870912
        %v602 = vshrl.u32 %v601, 30
        %v603 = vshll.u32 %v602, 30
        %v604 = vsub.s32 %v600, %v603
        %vm605 = vcmp.lt.s32.totalorder %v604, 0
        %v606 = vsub.s32 0, %v604
        %v607 = vsel %vm605, %v606, %v604
        %v608 = vclz %v607
        %v609 = vsub.s32 %v608, 2
        %vm610 = vcmp.gt.s32.totalorder 0, %v609
        %v611 = vsel %vm610, 0, %v609
        %v612 = vsub.s32 32, %v611
        %v613 = vshll.u32 %v604, %v611
        %v614 = vshrl.u32 %v596, %v612
        %v615 = vor.u32 %v613, %v614
        %v616 = vsub.s32 4294967266, %v611
        %v617 = vadd.s32 %v616, 127
        %v618 = vshll.u32 %v617, 23
        %v619 = vor.u32 4788187, %v618
        %v620 = vand.u32 2147483647, %v619
        %v622 = vcvt.s32.f32 %v615
        %v623 = vmul.f32 %v622, %v620
        %v624 = vxor.u32 %v623, 2147483648
        %v625 = vsel %vm542, %v624, %v623
        %v626 = vsub.s32 4, %v602
        %v627 = vsel %vm542, %v626, %v602
        %v628 = vsel %vm541, %v365, %v625
        %v629 = vsel %vm541, 0, %v627
        %v630 = vcosq.f32.pop %v628
        %v631 = vsinq.f32.pop %v628
        %vm632 = vweird.f32 %v365
        %v633 = vand.u32 %v629, 3
        %vm634 = vcmp.lt.s32.totalorder %v633, 2
        %vm635 = vcmp.eq.s32.totalorder %v633, 0
        %v636 = vxor.u32 %v631, 2147483648
        %v637 = vsel %vm635, %v630, %v636
        %vm638 = vcmp.eq.s32.totalorder %v633, 2
        %v639 = vxor.u32 %v630, 2147483648
        %v640 = vsel %vm638, %v639, %v631
        %v641 = vsel %vm634, %v637, %v640
        %v642 = vsel %vm632, nan, %v641
        %v643 = vand.u32 2147483647, %v434
        %vm644 = vcmp.le.f32.partialorder %v643, 0.7853982
        %vm645 = vcmp.lt.s32.totalorder %v434, 0
        %v646 = vand.u32 %v434, 2139095040
        %v647 = vshrl.u32 %v646, 23
        %v648 = vsub.s32 %v647, 127
        %v649 = vand.u32 2147483647, %v434
        %v650 = vand.u32 %v649, 8388607
        %v651 = vor.u32 %v650, 8388608
        %v652 = vsub.s32 0, %v651
        %v653 = vadd.s32 %v648, 1
        %vm654 = vcmp.gt.s32.totalorder %v653, 0
        %v655 = vsel %vm654, %v653, 0
        %v656 = vshrl.u32 %v655, 5
        %v657 = vand.u32 %v655, 31
        %v658 = vsub.s32 32, %v657
        %v659 = vshrl.u32 683565275, %v658
        %v660 = vshll.u32 683565275, %v657
        %v661 = vshrl.u32 2475754826, %v658
        %v662 = vor.u32 %v660, %v661
        %v663 = vshll.u32 2475754826, %v657
        %v664 = vshrl.u32 2131351028, %v658
        %v665 = vor.u32 %v663, %v664
        %v666 = vshll.u32 2131351028, %v657
        %v667 = vshrl.u32 2102212464, %v658
        %v668 = vor.u32 %v666, %v667
        %v669 = vshll.u32 2102212464, %v657
        %v670 = vshrl.u32 920167782, %v658
        %v671 = vor.u32 %v669, %v670
        %v672 = vshll.u32 920167782, %v657
        %v673 = vshrl.u32 1326507024, %v658
        %v674 = vor.u32 %v672, %v673
        %vm675 = vcmp.lt.s32.totalorder %v656, 1
        %vm676 = vcmp.lt.s32.totalorder %v656, 2
        %vm677 = vcmp.lt.s32.totalorder %v656, 3
        %vm678 = vcmp.lt.s32.totalorder %v656, 4
        %v679 = vsel %vm675, %v659, %v662
        %v680 = vsel %vm678, %v668, 2102212464
        %v681 = vsel %vm677, %v665, %v680
        %v682 = vsel %vm676, %v679, %v681
        %v683 = vsel %vm675, %v662, %v665
        %v684 = vsel %vm678, %v671, 920167782
        %v685 = vsel %vm677, %v668, %v684
        %v686 = vsel %vm676, %v683, %v685
        %v687 = vsel %vm675, %v665, %v668
        %v688 = vsel %vm678, %v674, 1326507024
        %v689 = vsel %vm677, %v671, %v688
        %v690 = vsel %vm676, %v687, %v689
        %v691 = vshll.u32 %v651, 8
        %v692 = vmul.u32.u64.compose %v691, %v690
        %v693 = vextract.low.u32 %v692
        %v694 = vextract.high.u32 %v692
        %v695 = vmul.u32.u64.compose %v691, %v686
        %v696 = vextract.low.u32 %v695
        %v697 = vextract.high.u32 %v695
        %v698 = vmul.u32 %v691, %v682
        %v699 = vadd.s32 %v694, %v696
        %vm700 = vc.u32 %v694, %v696
        %v701 = vadd.s32 %v697, 1
        %v702 = vsel %vm700, %v701, %v697
        %v703 = vadd.s32 %v698, %v702
        %v704 = vadd.s32 %v703, 536870912
        %v705 = vshrl.u32 %v704, 30
        %v706 = vshll.u32 %v705, 30
        %v707 = vsub.s32 %v703, %v706
        %vm708 = vcmp.lt.s32.totalorder %v707, 0
        %v709 = vsub.s32 0, %v707
        %v710 = vsel %vm708, %v709, %v707
        %v711 = vclz %v710
        %v712 = vsub.s32 %v711, 2
        %vm713 = vcmp.gt.s32.totalorder 0, %v712
        %v714 = vsel %vm713, 0, %v712
        %v715 = vsub.s32 32, %v714
        %v716 = vshll.u32 %v707, %v714
        %v717 = vshrl.u32 %v699, %v715
        %v718 = vor.u32 %v716, %v717
        %v719 = vsub.s32 4294967266, %v714
        %v720 = vadd.s32 %v719, 127
        %v721 = vshll.u32 %v720, 23
        %v722 = vor.u32 4788187, %v721
        %v723 = vand.u32 2147483647, %v722
        %v725 = vcvt.s32.f32 %v718
        %v726 = vmul.f32 %v725, %v723
        %v727 = vxor.u32 %v726, 2147483648
        %v728 = vsel %vm645, %v727, %v726
        %v729 = vsub.s32 4, %v705
        %v730 = vsel %vm645, %v729, %v705
        %v731 = vsel %vm644, %v434, %v728
        %v732 = vsel %vm644, 0, %v730
        %v733 = vcosq.f32.pop %v731
        %v734 = vsinq.f32.pop %v731
        %vm735 = vweird.f32 %v434
        %v736 = vand.u32 %v732, 3
        %vm737 = vcmp.lt.s32.totalorder %v736, 2
        %vm738 = vcmp.eq.s32.totalorder %v736, 0
        %v739 = vxor.u32 %v734, 2147483648
        %v740 = vsel %vm738, %v733, %v739
        %vm741 = vcmp.eq.s32.totalorder %v736, 2
        %v742 = vxor.u32 %v733, 2147483648
        %v743 = vsel %vm741, %v742, %v734
        %v744 = vsel %vm737, %v740, %v743
        %v745 = vsel %vm735, nan, %v744
        %v746 = vld [vmem:[%s265] sm:$0x7]
        %v748 = vlaneseq
        %v749 = vshrl.u32 %v748, 7
        %v750 = vsub.s32 0, %v749
        %v751 = vrot.slane %v746, %v750
        %v752 = vlaneseq
        %v753 = vshrl.u32 %v752, 7
        %v754 = vsub.s32 1, %v753
        %v755 = vrot.slane %v746, %v754
        %v756 = vlaneseq
        %v757 = vshrl.u32 %v756, 7
        %v758 = vsub.s32 2, %v757
        %v759 = vrot.slane %v746, %v758
        %v763 = vmul.f32 %v539, %v751
        %v764 = vmul.f32 %v642, %v755
        %v765 = vmul.f32 %v745, %v759
        %v766 = vand.u32 2147483647, %v363
        %vm767 = vcmp.le.f32.partialorder %v766, 0.7853982
        %vm768 = vcmp.lt.s32.totalorder %v363, 0
        %v769 = vand.u32 %v363, 2139095040
        %v770 = vshrl.u32 %v769, 23
        %v771 = vsub.s32 %v770, 127
        %v772 = vand.u32 2147483647, %v363
        %v773 = vand.u32 %v772, 8388607
        %v774 = vor.u32 %v773, 8388608
        %v775 = vsub.s32 0, %v774
        %v776 = vadd.s32 %v771, 1
        %vm777 = vcmp.gt.s32.totalorder %v776, 0
        %v778 = vsel %vm777, %v776, 0
        %v779 = vshrl.u32 %v778, 5
        %v780 = vand.u32 %v778, 31
        %v781 = vsub.s32 32, %v780
        %v782 = vshrl.u32 683565275, %v781
        %v783 = vshll.u32 683565275, %v780
        %v784 = vshrl.u32 2475754826, %v781
        %v785 = vor.u32 %v783, %v784
        %v786 = vshll.u32 2475754826, %v780
        %v787 = vshrl.u32 2131351028, %v781
        %v788 = vor.u32 %v786, %v787
        %v789 = vshll.u32 2131351028, %v780
        %v790 = vshrl.u32 2102212464, %v781
        %v791 = vor.u32 %v789, %v790
        %v792 = vshll.u32 2102212464, %v780
        %v793 = vshrl.u32 920167782, %v781
        %v794 = vor.u32 %v792, %v793
        %v795 = vshll.u32 920167782, %v780
        %v796 = vshrl.u32 1326507024, %v781
        %v797 = vor.u32 %v795, %v796
        %vm798 = vcmp.lt.s32.totalorder %v779, 1
        %vm799 = vcmp.lt.s32.totalorder %v779, 2
        %vm800 = vcmp.lt.s32.totalorder %v779, 3
        %vm801 = vcmp.lt.s32.totalorder %v779, 4
        %v802 = vsel %vm798, %v782, %v785
        %v803 = vsel %vm801, %v791, 2102212464
        %v804 = vsel %vm800, %v788, %v803
        %v805 = vsel %vm799, %v802, %v804
        %v806 = vsel %vm798, %v785, %v788
        %v807 = vsel %vm801, %v794, 920167782
        %v808 = vsel %vm800, %v791, %v807
        %v809 = vsel %vm799, %v806, %v808
        %v810 = vsel %vm798, %v788, %v791
        %v811 = vsel %vm801, %v797, 1326507024
        %v812 = vsel %vm800, %v794, %v811
        %v813 = vsel %vm799, %v810, %v812
        %v814 = vshll.u32 %v774, 8
        %v815 = vmul.u32.u64.compose %v814, %v813
        %v816 = vextract.low.u32 %v815
        %v817 = vextract.high.u32 %v815
        %v818 = vmul.u32.u64.compose %v814, %v809
        %v819 = vextract.low.u32 %v818
        %v820 = vextract.high.u32 %v818
        %v821 = vmul.u32 %v814, %v805
        %v822 = vadd.s32 %v817, %v819
        %vm823 = vc.u32 %v817, %v819
        %v824 = vadd.s32 %v820, 1
        %v825 = vsel %vm823, %v824, %v820
        %v826 = vadd.s32 %v821, %v825
        %v827 = vadd.s32 %v826, 536870912
        %v828 = vshrl.u32 %v827, 30
        %v829 = vshll.u32 %v828, 30
        %v830 = vsub.s32 %v826, %v829
        %vm831 = vcmp.lt.s32.totalorder %v830, 0
        %v832 = vsub.s32 0, %v830
        %v833 = vsel %vm831, %v832, %v830
        %v834 = vclz %v833
        %v835 = vsub.s32 %v834, 2
        %vm836 = vcmp.gt.s32.totalorder 0, %v835
        %v837 = vsel %vm836, 0, %v835
        %v838 = vsub.s32 32, %v837
        %v839 = vshll.u32 %v830, %v837
        %v840 = vshrl.u32 %v822, %v838
        %v841 = vor.u32 %v839, %v840
        %v842 = vsub.s32 4294967266, %v837
        %v843 = vadd.s32 %v842, 127
        %v844 = vshll.u32 %v843, 23
        %v845 = vor.u32 4788187, %v844
        %v846 = vand.u32 2147483647, %v845
        %v848 = vcvt.s32.f32 %v841
        %v849 = vmul.f32 %v848, %v846
        %v850 = vxor.u32 %v849, 2147483648
        %v851 = vsel %vm768, %v850, %v849
        %v852 = vsub.s32 4, %v828
        %v853 = vsel %vm768, %v852, %v828
        %v854 = vsel %vm767, %v363, %v851
        %v855 = vsel %vm767, 0, %v853
        %v856 = vcosq.f32.pop %v854
        %v857 = vsinq.f32.pop %v854
        %vm858 = vweird.f32 %v363
        %v859 = vadd.s32 %v855, 3
        %v860 = vand.u32 %v859, 3
        %vm861 = vcmp.lt.s32.totalorder %v860, 2
        %vm862 = vcmp.eq.s32.totalorder %v860, 0
        %v863 = vxor.u32 %v857, 2147483648
        %v864 = vsel %vm862, %v856, %v863
        %vm865 = vcmp.eq.s32.totalorder %v860, 2
        %v866 = vxor.u32 %v856, 2147483648
        %v867 = vsel %vm865, %v866, %v857
        %v868 = vsel %vm861, %v864, %v867
        %v869 = vsel %vm858, nan, %v868
        %v870 = vand.u32 2147483647, %v365
        %vm871 = vcmp.le.f32.partialorder %v870, 0.7853982
        %vm872 = vcmp.lt.s32.totalorder %v365, 0
        %v873 = vand.u32 %v365, 2139095040
        %v874 = vshrl.u32 %v873, 23
        %v875 = vsub.s32 %v874, 127
        %v876 = vand.u32 2147483647, %v365
        %v877 = vand.u32 %v876, 8388607
        %v878 = vor.u32 %v877, 8388608
        %v879 = vsub.s32 0, %v878
        %v880 = vadd.s32 %v875, 1
        %vm881 = vcmp.gt.s32.totalorder %v880, 0
        %v882 = vsel %vm881, %v880, 0
        %v883 = vshrl.u32 %v882, 5
        %v884 = vand.u32 %v882, 31
        %v885 = vsub.s32 32, %v884
        %v886 = vshrl.u32 683565275, %v885
        %v887 = vshll.u32 683565275, %v884
        %v888 = vshrl.u32 2475754826, %v885
        %v889 = vor.u32 %v887, %v888
        %v890 = vshll.u32 2475754826, %v884
        %v891 = vshrl.u32 2131351028, %v885
        %v892 = vor.u32 %v890, %v891
        %v893 = vshll.u32 2131351028, %v884
        %v894 = vshrl.u32 2102212464, %v885
        %v895 = vor.u32 %v893, %v894
        %v896 = vshll.u32 2102212464, %v884
        %v897 = vshrl.u32 920167782, %v885
        %v898 = vor.u32 %v896, %v897
        %v899 = vshll.u32 920167782, %v884
        %v900 = vshrl.u32 1326507024, %v885
        %v901 = vor.u32 %v899, %v900
        %vm902 = vcmp.lt.s32.totalorder %v883, 1
        %vm903 = vcmp.lt.s32.totalorder %v883, 2
        %vm904 = vcmp.lt.s32.totalorder %v883, 3
        %vm905 = vcmp.lt.s32.totalorder %v883, 4
        %v906 = vsel %vm902, %v886, %v889
        %v907 = vsel %vm905, %v895, 2102212464
        %v908 = vsel %vm904, %v892, %v907
        %v909 = vsel %vm903, %v906, %v908
        %v910 = vsel %vm902, %v889, %v892
        %v911 = vsel %vm905, %v898, 920167782
        %v912 = vsel %vm904, %v895, %v911
        %v913 = vsel %vm903, %v910, %v912
        %v914 = vsel %vm902, %v892, %v895
        %v915 = vsel %vm905, %v901, 1326507024
        %v916 = vsel %vm904, %v898, %v915
        %v917 = vsel %vm903, %v914, %v916
        %v918 = vshll.u32 %v878, 8
        %v919 = vmul.u32.u64.compose %v918, %v917
        %v920 = vextract.low.u32 %v919
        %v921 = vextract.high.u32 %v919
        %v922 = vmul.u32.u64.compose %v918, %v913
        %v923 = vextract.low.u32 %v922
        %v924 = vextract.high.u32 %v922
        %v925 = vmul.u32 %v918, %v909
        %v926 = vadd.s32 %v921, %v923
        %vm927 = vc.u32 %v921, %v923
        %v928 = vadd.s32 %v924, 1
        %v929 = vsel %vm927, %v928, %v924
        %v930 = vadd.s32 %v925, %v929
        %v931 = vadd.s32 %v930, 536870912
        %v932 = vshrl.u32 %v931, 30
        %v933 = vshll.u32 %v932, 30
        %v934 = vsub.s32 %v930, %v933
        %vm935 = vcmp.lt.s32.totalorder %v934, 0
        %v936 = vsub.s32 0, %v934
        %v937 = vsel %vm935, %v936, %v934
        %v938 = vclz %v937
        %v939 = vsub.s32 %v938, 2
        %vm940 = vcmp.gt.s32.totalorder 0, %v939
        %v941 = vsel %vm940, 0, %v939
        %v942 = vsub.s32 32, %v941
        %v943 = vshll.u32 %v934, %v941
        %v944 = vshrl.u32 %v926, %v942
        %v945 = vor.u32 %v943, %v944
        %v946 = vsub.s32 4294967266, %v941
        %v947 = vadd.s32 %v946, 127
        %v948 = vshll.u32 %v947, 23
        %v949 = vor.u32 4788187, %v948
        %v950 = vand.u32 2147483647, %v949
        %v952 = vcvt.s32.f32 %v945
        %v953 = vmul.f32 %v952, %v950
        %v954 = vxor.u32 %v953, 2147483648
        %v955 = vsel %vm872, %v954, %v953
        %v956 = vsub.s32 4, %v932
        %v957 = vsel %vm872, %v956, %v932
        %v958 = vsel %vm871, %v365, %v955
        %v959 = vsel %vm871, 0, %v957
        %v960 = vcosq.f32.pop %v958
        %v961 = vsinq.f32.pop %v958
        %vm962 = vweird.f32 %v365
        %v963 = vadd.s32 %v959, 3
        %v964 = vand.u32 %v963, 3
        %vm965 = vcmp.lt.s32.totalorder %v964, 2
        %vm966 = vcmp.eq.s32.totalorder %v964, 0
        %v967 = vxor.u32 %v961, 2147483648
        %v968 = vsel %vm966, %v960, %v967
        %vm969 = vcmp.eq.s32.totalorder %v964, 2
        %v970 = vxor.u32 %v960, 2147483648
        %v971 = vsel %vm969, %v970, %v961
        %v972 = vsel %vm965, %v968, %v971
        %v973 = vsel %vm962, nan, %v972
        %v974 = vand.u32 2147483647, %v434
        %vm975 = vcmp.le.f32.partialorder %v974, 0.7853982
        %vm976 = vcmp.lt.s32.totalorder %v434, 0
        %v977 = vand.u32 %v434, 2139095040
        %v978 = vshrl.u32 %v977, 23
        %v979 = vsub.s32 %v978, 127
        %v980 = vand.u32 2147483647, %v434
        %v981 = vand.u32 %v980, 8388607
        %v982 = vor.u32 %v981, 8388608
        %v983 = vsub.s32 0, %v982
        %v984 = vadd.s32 %v979, 1
        %vm985 = vcmp.gt.s32.totalorder %v984, 0
        %v986 = vsel %vm985, %v984, 0
        %v987 = vshrl.u32 %v986, 5
        %v988 = vand.u32 %v986, 31
        %v989 = vsub.s32 32, %v988
        %v990 = vshrl.u32 683565275, %v989
        %v991 = vshll.u32 683565275, %v988
        %v992 = vshrl.u32 2475754826, %v989
        %v993 = vor.u32 %v991, %v992
        %v994 = vshll.u32 2475754826, %v988
        %v995 = vshrl.u32 2131351028, %v989
        %v996 = vor.u32 %v994, %v995
        %v997 = vshll.u32 2131351028, %v988
        %v998 = vshrl.u32 2102212464, %v989
        %v999 = vor.u32 %v997, %v998
        %v1000 = vshll.u32 2102212464, %v988
        %v1001 = vshrl.u32 920167782, %v989
        %v1002 = vor.u32 %v1000, %v1001
        %v1003 = vshll.u32 920167782, %v988
        %v1004 = vshrl.u32 1326507024, %v989
        %v1005 = vor.u32 %v1003, %v1004
        %vm1006 = vcmp.lt.s32.totalorder %v987, 1
        %vm1007 = vcmp.lt.s32.totalorder %v987, 2
        %vm1008 = vcmp.lt.s32.totalorder %v987, 3
        %vm1009 = vcmp.lt.s32.totalorder %v987, 4
        %v1010 = vsel %vm1006, %v990, %v993
        %v1011 = vsel %vm1009, %v999, 2102212464
        %v1012 = vsel %vm1008, %v996, %v1011
        %v1013 = vsel %vm1007, %v1010, %v1012
        %v1014 = vsel %vm1006, %v993, %v996
        %v1015 = vsel %vm1009, %v1002, 920167782
        %v1016 = vsel %vm1008, %v999, %v1015
        %v1017 = vsel %vm1007, %v1014, %v1016
        %v1018 = vsel %vm1006, %v996, %v999
        %v1019 = vsel %vm1009, %v1005, 1326507024
        %v1020 = vsel %vm1008, %v1002, %v1019
        %v1021 = vsel %vm1007, %v1018, %v1020
        %v1022 = vshll.u32 %v982, 8
        %v1023 = vmul.u32.u64.compose %v1022, %v1021
        %v1024 = vextract.low.u32 %v1023
        %v1025 = vextract.high.u32 %v1023
        %v1026 = vmul.u32.u64.compose %v1022, %v1017
        %v1027 = vextract.low.u32 %v1026
        %v1028 = vextract.high.u32 %v1026
        %v1029 = vmul.u32 %v1022, %v1013
        %v1030 = vadd.s32 %v1025, %v1027
        %vm1031 = vc.u32 %v1025, %v1027
        %v1032 = vadd.s32 %v1028, 1
        %v1033 = vsel %vm1031, %v1032, %v1028
        %v1034 = vadd.s32 %v1029, %v1033
        %v1035 = vadd.s32 %v1034, 536870912
        %v1036 = vshrl.u32 %v1035, 30
        %v1037 = vshll.u32 %v1036, 30
        %v1038 = vsub.s32 %v1034, %v1037
        %vm1039 = vcmp.lt.s32.totalorder %v1038, 0
        %v1040 = vsub.s32 0, %v1038
        %v1041 = vsel %vm1039, %v1040, %v1038
        %v1042 = vclz %v1041
        %v1043 = vsub.s32 %v1042, 2
        %vm1044 = vcmp.gt.s32.totalorder 0, %v1043
        %v1045 = vsel %vm1044, 0, %v1043
        %v1046 = vsub.s32 32, %v1045
        %v1047 = vshll.u32 %v1038, %v1045
        %v1048 = vshrl.u32 %v1030, %v1046
        %v1049 = vor.u32 %v1047, %v1048
        %v1050 = vsub.s32 4294967266, %v1045
        %v1051 = vadd.s32 %v1050, 127
        %v1052 = vshll.u32 %v1051, 23
        %v1053 = vor.u32 4788187, %v1052
        %v1054 = vand.u32 2147483647, %v1053
        %v1056 = vcvt.s32.f32 %v1049
        %v1057 = vmul.f32 %v1056, %v1054
        %v1058 = vxor.u32 %v1057, 2147483648
        %v1059 = vsel %vm976, %v1058, %v1057
        %v1060 = vsub.s32 4, %v1036
        %v1061 = vsel %vm976, %v1060, %v1036
        %v1062 = vsel %vm975, %v434, %v1059
        %v1063 = vsel %vm975, 0, %v1061
        %v1064 = vcosq.f32.pop %v1062
        %v1065 = vsinq.f32.pop %v1062
        %vm1066 = vweird.f32 %v434
        %v1067 = vadd.s32 %v1063, 3
        %v1068 = vand.u32 %v1067, 3
        %vm1069 = vcmp.lt.s32.totalorder %v1068, 2
        %vm1070 = vcmp.eq.s32.totalorder %v1068, 0
        %v1071 = vxor.u32 %v1065, 2147483648
        %v1072 = vsel %vm1070, %v1064, %v1071
        %vm1073 = vcmp.eq.s32.totalorder %v1068, 2
        %v1074 = vxor.u32 %v1064, 2147483648
        %v1075 = vsel %vm1073, %v1074, %v1065
        %v1076 = vsel %vm1069, %v1072, %v1075
        %v1077 = vsel %vm1066, nan, %v1076
        %1078 = vst [vmem:[#allocation2] sm:$0xff] %v763
        %1079 = vst [vmem:[#allocation2 + $0x8] sm:$0xff] %v869
        %1080 = vst [vmem:[#allocation2 + $0x10] sm:$0xff] %v764
        %1081 = vst [vmem:[#allocation2 + $0x18] sm:$0xff] %v973
        %1082 = vst [vmem:[#allocation2 + $0x20] sm:$0xff] %v765
        %1083 = vst [vmem:[#allocation2 + $0x28] sm:$0xff] %v1077
        %v1084 = vld [vmem:[%s261] sm:$0xff]
        %v1085 = vld [vmem:[#allocation2] sm:$0xff]
        %v1086 = vld [vmem:[#allocation2 + $0x8] sm:$0xff]
        %v1087 = vld [vmem:[#allocation2 + $0x10] sm:$0xff]
        %v1088 = vld [vmem:[#allocation2 + $0x18] sm:$0xff]
        %v1089 = vld [vmem:[#allocation2 + $0x20] sm:$0xff]
        %v1090 = vld [vmem:[#allocation2 + $0x28] sm:$0xff]
        %vm1091 = vcmask 392192
        %v1093 = vsel %vm1091, %v1084, 0
        %1095 = vmatprep.subr.mxu0 0.0
        %1096 = vmatpush1.msra.mxu0 0.0
        %1097 = vmatprep.subr.mxu0 0.0
        %1098 = vmatpush1.msra.mxu0 0.0
        %1099 = vmatprep.subr.mxu0 0.0
        %1100 = vmatpush1.msra.mxu0 0.0
        %1101 = vmatprep.subr.mxu0 0.0
        %1102 = vmatpush1.msra.mxu0 0.0
        %1103 = vmatprep.subr.mxu0 0.0
        %1104 = vmatpush1.msra.mxu0 0.0
        %1105 = vmatprep.subr.mxu0 0.0
        %1106 = vmatpush1.msra.mxu0 0.0
        %1107 = vmatprep.subr.mxu0 0.0
        %1108 = vmatpush1.msra.mxu0 0.0
        %1109 = vmatprep.subr.mxu0 0.0
        %1110 = vmatpush1.msra.mxu0 0.0
        %1111 = vmatprep.subr.mxu0 0.0
        %1112 = vmatpush1.msra.mxu0 0.0
        %1113 = vmatprep.subr.mxu0 0.0
        %1114 = vmatpush1.msra.mxu0 0.0
        %1115 = vmatprep.subr.mxu0 0.0
        %1116 = vmatpush1.msra.mxu0 %v1090
        %1117 = vmatprep.subr.mxu0 0.0
        %1118 = vmatpush1.msra.mxu0 %v1089
        %1119 = vmatprep.subr.mxu0 0.0
        %1120 = vmatpush1.msra.mxu0 %v1088
        %1121 = vmatprep.subr.mxu0 0.0
        %1122 = vmatpush1.msra.mxu0 %v1087
        %1123 = vmatprep.subr.mxu0 0.0
        %1124 = vmatpush1.msra.mxu0 %v1086
        %1125 = vmatprep.subr.mxu0 0.0
        %1126 = vmatpush1.msra.mxu0 %v1085
        %1127 = vmatprep.subr.mxu0 0.0
        %1128 = vmatpush2.msra.mxu0 0.0
        %1129 = vmatprep.subr.mxu0 0.0
        %1130 = vmatpush2.msra.mxu0 0.0
        %1131 = vmatprep.subr.mxu0 0.0
        %1132 = vmatpush2.msra.mxu0 0.0
        %1133 = vmatprep.subr.mxu0 0.0
        %1134 = vmatpush2.msra.mxu0 0.0
        %1135 = vmatprep.subr.mxu0 0.0
        %1136 = vmatpush2.msra.mxu0 0.0
        %1137 = vmatprep.subr.mxu0 0.0
        %1138 = vmatpush2.msra.mxu0 0.0
        %1139 = vmatprep.subr.mxu0 0.0
        %1140 = vmatpush2.msra.mxu0 0.0
        %1141 = vmatprep.subr.mxu0 0.0
        %1142 = vmatpush2.msra.mxu0 0.0
        %1143 = vmatprep.subr.mxu0 0.0
        %1144 = vmatpush2.msra.mxu0 0.0
        %1145 = vmatprep.subr.mxu0 0.0
        %1146 = vmatpush2.msra.mxu0 0.0
        %1147 = vmatprep.subr.mxu0 0.0
        %1148 = vmatpush2.msra.mxu0 0.0
        %1149 = vmatprep.subr.mxu0 0.0
        %1150 = vmatpush2.msra.mxu0 0.0
        %1151 = vmatprep.subr.mxu0 0.0
        %1152 = vmatpush2.msra.mxu0 0.0
        %1153 = vmatprep.subr.mxu0 0.0
        %1154 = vmatpush2.msra.mxu0 0.0
        %1155 = vmatprep.subr.mxu0 0.0
        %1156 = vmatpush2.msra.mxu0 0.0
        %1157 = vmatprep.subr.mxu0 0.0
        %1158 = vmatpush2.msra.mxu0 0.0
        %1159 = vmatprep.mubr.f32.mxu0 0.0
        %1160 = vmatmul.mubr.f32.gmra.mxu0 %v1093
        %v1161 = vpop.f32.mrf.mxu0
        %v1162 = vadd.f32 0.0, %v1161
        %v1163 = vpop.f32.mrf.mxu0
        %1164 = vdwg.mxu0
        %1165 = vst [vmem:[%s253] sm:$0xff] %v1162
        %s1166 = sand.u32 %s146, 1
        %s1167 = scalar_lea.sflag [#allocation4], %s1166
        %s1168 = sand.u32 %s146, 1
        %s1169 = smul.addr %s1168, 8
        %s1170 = scalar_lea.vmem [#allocation3], %s1169
        // Predicated region
        $region37: #{tpu_custom_call.1} parent=35 // pred_check
          %p1171 = pneg %p156
        $region38: #{tpu_custom_call.1} parent=35 // pred_check_branch
          %1173 = sbr.rel (%p1171) target = $region40
        $region39: #{tpu_custom_call.1} parent=35 // pred_region
          %s1175 = ssub.s32 128, 128
          %1176 = vsyncadd %s1167, %s1175
          %s1177 = sadd.s32 %s23, %s22
          %s1178 = smul.addr %s1177, 128
          %s1179 = scalar_lea.hbm %s4, %s1178
          %s1181 = sshll.u32 %s1170, 4
          %s1182 = int_to_ptr.vmem [resolvable:$true] %s1181
          %1184 = dma.vmem_to_hbm [thread:$0]  %s1182, 128, %s1179, %s1167
        $region40: #{tpu_custom_call.1} parent=35 // pred_fallthru
          _
      $region36: #{tpu_custom_call.1} parent=5 // pred_fallthru
        _
      %p1185 = scmp.le.s32.totalorder 2, %s13
      // Predicated region
      $region41: #{tpu_custom_call.1} parent=5 // pred_check
        %p1186 = pneg %p1185
      $region42: #{tpu_custom_call.1} parent=5 // pred_check_branch
        %1188 = sbr.rel (%p1186) target = $region44
      $region43: #{tpu_custom_call.1} parent=5 // pred_region
        %s1189 = ssub.s32 %s13, 2
        // Predicated region
        $region45: #{tpu_custom_call.1} parent=43 // pred_check
          %p1190 = pneg %p162
        $region46: #{tpu_custom_call.1} parent=43 // pred_check_branch
          %1192 = sbr.rel (%p1190) target = $region48
        $region47: #{tpu_custom_call.1} parent=43 // pred_region
          %s1193 = sand.u32 %s147, 1
          %s1194 = scalar_lea.sflag [#allocation4], %s1193
          %s1195 = sand.u32 %s147, 1
          %s1196 = smul.addr %s1195, 8
          %s1197 = scalar_lea.vmem [#allocation3], %s1196
          %1198 = dma.done %s1194, 128
        $region48: #{tpu_custom_call.1} parent=43 // pred_fallthru
          _
      $region44: #{tpu_custom_call.1} parent=5 // pred_fallthru
        _
    $region6: #{tpu_custom_call.1} parent=1 // loop_footer
      %s17 = sadd.s32 1, %s13
    $region7: #{tpu_custom_call.1} parent=1 // loop_footer_branch
      %12 = sbr.rel target = $region3
    $region8: #{tpu_custom_call.1} parent=1 // loop_exit
      _
    %1199 = vsyncpa [#allocation4], 1
    %s1200 = scalar_lea.sflag [#allocation4], 1
    %1201 = vsyncpa %s1200, 1

</llo_original>
